<compile_context>
chip_gen: v7x
topology: tpu7x:2x2x1
jax: 0.10.0
libtpu: 0.0.40
codegen_flags: <defaults>
</compile_context>

<pallas_src>
import jax
import jax.numpy as jnp
from jax.experimental import pallas as pl
from jax.experimental.pallas import tpu as pltpu

_LANE = 512            # lane-dense last dim (multiple of 128) -> wide unmasked stores
_MAX_BLOCK_ROWS = 512  # (512, 512) f32 block = 1 MiB per operand per grid step


def _round_up(x, m):
    return ((x + m - 1) // m) * m


# ----------------------------- Pallas kernel ------------------------------ #

def _ema_kernel(m_ref, t_ref, s_ref, o_ref):
    # EMA computed in f32 regardless of storage dtype (keeps precision for
    # bf16 params), written back in the native dtype so HBM traffic stays at
    # native width.  Pure VPU elementwise work on a VMEM tile.
    m = m_ref[0]                                   # f32 scalar from SMEM
    t = t_ref[...].astype(jnp.float32)
    s = s_ref[...].astype(jnp.float32)
    o_ref[...] = (t * m + (jnp.float32(1.0) - m) * s).astype(o_ref.dtype)


def _fused_ema(t_flat, s_flat, momentum):
    """EMA over one flat (already concatenated) buffer with a single pallas_call."""
    n = t_flat.shape[0]
    dtype = t_flat.dtype

    rows_needed = pl.cdiv(n, _LANE)
    block_rows = min(_MAX_BLOCK_ROWS, _round_up(rows_needed, 8))
    rows = _round_up(rows_needed, block_rows)
    n_pad = rows * _LANE

    t2 = jnp.pad(t_flat, (0, n_pad - n)).reshape(rows, _LANE)
    s2 = jnp.pad(s_flat, (0, n_pad - n)).reshape(rows, _LANE)
    m_arr = jnp.reshape(momentum.astype(jnp.float32), (1,))

    out = pl.pallas_call(
        _ema_kernel,
        out_shape=jax.ShapeDtypeStruct((rows, _LANE), dtype),
        grid=(rows // block_rows,),
        in_specs=[
            pl.BlockSpec(memory_space=pltpu.MemorySpace.SMEM),    # momentum
            pl.BlockSpec((block_rows, _LANE), lambda i: (i, 0)),  # teacher
            pl.BlockSpec((block_rows, _LANE), lambda i: (i, 0)),  # student
        ],
        out_specs=pl.BlockSpec((block_rows, _LANE), lambda i: (i, 0)),
        # Update the teacher buffer in place (no second full-model HBM alloc).
        input_output_aliases={1: 0},
        compiler_params=pltpu.CompilerParams(
            dimension_semantics=("parallel",)),
    )(m_arr, t2, s2)

    return out.reshape(-1)[:n]


# --------------------------- Module-level wrapper -------------------------- #

def _momentum_update_impl(state_dict_student, state_dict_teacher, momentum):
    new_teacher = {}
    groups = {}   # dtype -> [keys] ; fused into one pallas_call per dtype

    for k, v_t in state_dict_teacher.items():
        v_s = state_dict_student[k]               # match by key, not zip order
        if "num_batches_tracked" in k:
            new_teacher[k] = v_s                  # direct copy, no EMA
        elif not jnp.issubdtype(v_t.dtype, jnp.floating):
            # Rare non-float buffer: EMA in f32, truncate back to the integer
            # dtype (matches torch copy_ of a float result into an int tensor).
            new_teacher[k] = (v_t.astype(jnp.float32) * momentum
                              + (1.0 - momentum) * v_s.astype(jnp.float32)
                              ).astype(v_t.dtype)
        else:
            groups.setdefault(v_t.dtype, []).append(k)

    for dtype, keys in groups.items():
        t_flat = jnp.concatenate(
            [state_dict_teacher[k].reshape(-1) for k in keys])
        s_flat = jnp.concatenate(
            [state_dict_student[k].reshape(-1).astype(dtype) for k in keys])
        out_flat = _fused_ema(t_flat, s_flat, momentum)
        off = 0
        for k in keys:
            v_t = state_dict_teacher[k]
            new_teacher[k] = out_flat[off:off + v_t.size].reshape(v_t.shape)
            off += v_t.size

    return new_teacher


_momentum_update_jit = jax.jit(_momentum_update_impl)
# TODO(synk): callers that want a true in-place teacher update can additionally
# donate the teacher pytree at their own jit boundary; not done here so the demo
# can keep the old teacher around for the reference check.


def momentum_update(state_dict_student, state_dict_teacher, momentum):
    """JAX equivalent of Momentum_Update.forward; returns the new teacher dict."""
    return _momentum_update_jit(state_dict_student, state_dict_teacher,
                                jnp.float32(momentum))


# --------------------------------- Demo ------------------------------------ #

if __name__ == "__main__":
    key = jax.random.PRNGKey(0)
    ks = jax.random.split(key, 14)

    # Deterministic synthetic "model" state dicts (conv + BN + fc style params).
    def make_state(keys):
        return {
            "conv.weight":            jax.random.normal(keys[0], (8, 4, 3, 3), jnp.float32),
            "bn.weight":              jax.random.normal(keys[1], (8,), jnp.float32),
            "bn.bias":                jax.random.normal(keys[2], (8,), jnp.float32),
            "bn.running_mean":        jax.random.normal(keys[3], (8,), jnp.float32),
            "bn.running_var":         jax.random.uniform(keys[4], (8,), jnp.float32) + 0.5,
            "bn.num_batches_tracked": jnp.array(7, dtype=jnp.int32),
            "fc.weight":              jax.random.normal(keys[5], (16, 32), jnp.float32),
            # bf16 param exercises the native-dtype I/O + f32-math path.
            "fc.bias":                jax.random.normal(keys[6], (16,), jnp.float32).astype(jnp.bfloat16),
        }

    student = make_state(ks[0:7])
    teacher = make_state(ks[7:14])
    # Make the int buffer differ so the copy branch is observable.
    teacher["bn.num_batches_tracked"] = jnp.array(3, dtype=jnp.int32)

    momentum = 0.999

    new_teacher = momentum_update(student, teacher, momentum)
    new_teacher = jax.block_until_ready(new_teacher)

    # Reference check (pure jnp, same f32 math + cast-back).
    ok = True
    for k in teacher:
        if "num_batches_tracked" in k:
            ref = student[k]
        else:
            ref = (teacher[k].astype(jnp.float32) * momentum
                   + (1.0 - momentum) * student[k].astype(jnp.float32)
                   ).astype(teacher[k].dtype)
        got = new_teacher[k]
        if got.dtype != ref.dtype or got.shape != ref.shape:
            ok = False
            print(f"DTYPE/SHAPE MISMATCH in {k}: "
                  f"{got.dtype}{got.shape} vs {ref.dtype}{ref.shape}")
            continue
        tol = 1e-2 if got.dtype == jnp.dtype(jnp.bfloat16) else 1e-6
        if not jnp.allclose(got.astype(jnp.float32), ref.astype(jnp.float32),
                            atol=tol, rtol=tol):
            ok = False
            print(f"MISMATCH in {k}")

    if ok:
        print("KERNEL_OK")
</pallas_src>

<mosaic_0001>
module attributes {stable_mosaic.version = 11 : i64} {
  func.func @_ema_kernel(%arg0: i32, %arg1: memref<1xf32, #tpu.memory_space<smem>>, %arg2: memref<8x512xbf16, #tpu.memory_space<vmem>>, %arg3: memref<8x512xbf16, #tpu.memory_space<vmem>>, %arg4: memref<8x512xbf16, #tpu.memory_space<vmem>>) attributes {dimension_semantics = [#tpu.dimension_semantics<parallel>], iteration_bounds = array<i64: 1>, scalar_prefetch = 0 : i64, scratch_operands = 0 : i64, tpu.core_type = #tpu.core_type<tc>, window_params = [{transform_indices = @transform_0, window_bounds = array<i64: 1>}, {transform_indices = @transform_1, window_bounds = array<i64: 8, 512>}, {transform_indices = @transform_2, window_bounds = array<i64: 8, 512>}, {transform_indices = @transform_3, window_bounds = array<i64: 8, 512>}]} {
    %c0 = arith.constant 0 : index
    %0 = memref.load %arg1[%c0] : memref<1xf32, #tpu.memory_space<smem>>
    %c0_0 = arith.constant 0 : index
    %c0_1 = arith.constant 0 : index
    %1 = vector.load %arg2[%c0_0, %c0_1] : memref<8x512xbf16, #tpu.memory_space<vmem>>, vector<8x512xbf16>
    %2 = arith.extf %1 : vector<8x512xbf16> to vector<8x512xf32>
    %c0_2 = arith.constant 0 : index
    %c0_3 = arith.constant 0 : index
    %3 = vector.load %arg3[%c0_2, %c0_3] : memref<8x512xbf16, #tpu.memory_space<vmem>>, vector<8x512xbf16>
    %4 = arith.extf %3 : vector<8x512xbf16> to vector<8x512xf32>
    %5 = vector.broadcast %0 : f32 to vector<8x512xf32>
    %6 = arith.mulf %2, %5 : vector<8x512xf32>
    %cst = arith.constant 1.000000e+00 : f32
    %7 = arith.subf %cst, %0 : f32
    %8 = vector.broadcast %7 : f32 to vector<8x512xf32>
    %9 = arith.mulf %8, %4 : vector<8x512xf32>
    %10 = arith.addf %6, %9 : vector<8x512xf32>
    %11 = arith.truncf %10 : vector<8x512xf32> to vector<8x512xbf16>
    %c0_4 = arith.constant 0 : index
    %c0_5 = arith.constant 0 : index
    %12 = vector.load %arg4[%c0_4, %c0_5] : memref<8x512xbf16, #tpu.memory_space<vmem>>, vector<8x512xbf16>
    tpu.vector_store %arg4[%c0_4, %c0_5], %11 {strides = array<i32>} : memref<8x512xbf16, #tpu.memory_space<vmem>>, vector<8x512xbf16>,
    return
  }
  func.func @transform_0(%arg0: i32) -> i32 {
    %c0_i32 = arith.constant 0 : i32
    %c0_i32_0 = arith.constant 0 : i32
    return %c0_i32 : i32
  }
  func.func @transform_1(%arg0: i32) -> (i32, i32) {
    %c0_i32 = arith.constant 0 : i32
    %c0_i32_0 = arith.constant 0 : i32
    return %arg0, %c0_i32 : i32, i32
  }
  func.func @transform_2(%arg0: i32) -> (i32, i32) {
    %c0_i32 = arith.constant 0 : i32
    %c0_i32_0 = arith.constant 0 : i32
    return %arg0, %c0_i32 : i32, i32
  }
  func.func @transform_3(%arg0: i32) -> (i32, i32) {
    %c0_i32 = arith.constant 0 : i32
    %c0_i32_0 = arith.constant 0 : i32
    return %arg0, %c0_i32 : i32, i32
  }
}

module attributes {stable_mosaic.version = 11 : i64} {
  func.func @_ema_kernel(%arg0: i32, %arg1: memref<1xf32, #tpu.memory_space<smem>>, %arg2: memref<8x512xf32, #tpu.memory_space<vmem>>, %arg3: memref<8x512xf32, #tpu.memory_space<vmem>>, %arg4: memref<8x512xf32, #tpu.memory_space<vmem>>) attributes {dimension_semantics = [#tpu.dimension_semantics<parallel>], iteration_bounds = array<i64: 1>, scalar_prefetch = 0 : i64, scratch_operands = 0 : i64, tpu.core_type = #tpu.core_type<tc>, window_params = [{transform_indices = @transform_0, window_bounds = array<i64: 1>}, {transform_indices = @transform_1, window_bounds = array<i64: 8, 512>}, {transform_indices = @transform_2, window_bounds = array<i64: 8, 512>}, {transform_indices = @transform_3, window_bounds = array<i64: 8, 512>}]} {
    %c0 = arith.constant 0 : index
    %0 = memref.load %arg1[%c0] : memref<1xf32, #tpu.memory_space<smem>>
    %c0_0 = arith.constant 0 : index
    %c0_1 = arith.constant 0 : index
    %1 = vector.load %arg2[%c0_0, %c0_1] : memref<8x512xf32, #tpu.memory_space<vmem>>, vector<8x512xf32>
    %c0_2 = arith.constant 0 : index
    %c0_3 = arith.constant 0 : index
    %2 = vector.load %arg3[%c0_2, %c0_3] : memref<8x512xf32, #tpu.memory_space<vmem>>, vector<8x512xf32>
    %3 = vector.broadcast %0 : f32 to vector<8x512xf32>
    %4 = arith.mulf %1, %3 : vector<8x512xf32>
    %cst = arith.constant 1.000000e+00 : f32
    %5 = arith.subf %cst, %0 : f32
    %6 = vector.broadcast %5 : f32 to vector<8x512xf32>
    %7 = arith.mulf %6, %2 : vector<8x512xf32>
    %8 = arith.addf %4, %7 : vector<8x512xf32>
    %c0_4 = arith.constant 0 : index
    %c0_5 = arith.constant 0 : index
    %9 = vector.load %arg4[%c0_4, %c0_5] : memref<8x512xf32, #tpu.memory_space<vmem>>, vector<8x512xf32>
    tpu.vector_store %arg4[%c0_4, %c0_5], %8 {strides = array<i32>} : memref<8x512xf32, #tpu.memory_space<vmem>>, vector<8x512xf32>,
    return
  }
  func.func @transform_0(%arg0: i32) -> i32 {
    %c0_i32 = arith.constant 0 : i32
    %c0_i32_0 = arith.constant 0 : i32
    return %c0_i32 : i32
  }
  func.func @transform_1(%arg0: i32) -> (i32, i32) {
    %c0_i32 = arith.constant 0 : i32
    %c0_i32_0 = arith.constant 0 : i32
    return %arg0, %c0_i32 : i32, i32
  }
  func.func @transform_2(%arg0: i32) -> (i32, i32) {
    %c0_i32 = arith.constant 0 : i32
    %c0_i32_0 = arith.constant 0 : i32
    return %arg0, %c0_i32 : i32, i32
  }
  func.func @transform_3(%arg0: i32) -> (i32, i32) {
    %c0_i32 = arith.constant 0 : i32
    %c0_i32_0 = arith.constant 0 : i32
    return %arg0, %c0_i32 : i32, i32
  }
}

</mosaic_0001>

<llo_original>
// kernel: _momentum_update_impl.3
$region0: #{_momentum_update_impl.3}
  #allocation0 [shape = 'u32[]', space=smem, size = 0x4, offset = 0x4, fixed_abs, tag = 'smem constant byte address 0x4 - core index']
  #allocation1 [shape = 'u32[144,128]{1,0:T(1,128)}', space=vmem, size = 0x12000, scoped, tag = 'internal scratch']
  #allocation2 [shape = 'f32[1]{0:T(128)S(6)}', space=smem, size = 0x200, scoped, tag = 'scoped memory for _momentum_update_impl.3']
  %s0 = inlined_call_operand.<no memory space> [shape: f32[1], index: 0, kind: input, shape index: {}]
  %s1 = inlined_call_operand.vmem [shape: bf16[8,512], index: 1, kind: input, shape index: {}, may-alias: {1,3}]
  %s2 = inlined_call_operand.vmem [shape: bf16[8,512], index: 2, kind: input, shape index: {}]
  %s3 = inlined_call_operand.vmem [shape: bf16[8,512], index: 3, kind: output, shape index: {}, may-alias: {1,3}]
  %s4 = sld [smem:[#allocation0]]
  $region22: #{_momentum_update_impl.3} parent=0
    _
  %s6 = ssub.s32 1, %s4
  %s7 = scalar_select 0, %s6, %s4
  %8 = sst [smem:[#allocation2]] %s0
  // Predicated region
  $region2: #{_momentum_update_impl.3} parent=0 // pred_check
    _
  $region3: #{_momentum_update_impl.3} parent=0 // pred_check_branch
    %10 = sbr.rel (0) target = $region5
  $region4: #{_momentum_update_impl.3} parent=0 // pred_region
    _
  $region5: #{_momentum_update_impl.3} parent=0 // pred_fallthru
    _
  // Predicated region
  $region6: #{_momentum_update_impl.3} parent=0 // pred_check
    _
  $region7: #{_momentum_update_impl.3} parent=0 // pred_check_branch
    %12 = sbr.rel (0) target = $region9
  $region8: #{_momentum_update_impl.3} parent=0 // pred_region
    _
  $region9: #{_momentum_update_impl.3} parent=0 // pred_fallthru
    _
  // Predicated region
  $region10: #{_momentum_update_impl.3} parent=0 // pred_check
    _
  $region11: #{_momentum_update_impl.3} parent=0 // pred_check_branch
    %14 = sbr.rel (0) target = $region13
  $region12: #{_momentum_update_impl.3} parent=0 // pred_region
    _
  $region13: #{_momentum_update_impl.3} parent=0 // pred_fallthru
    _
  %s15 = sld [smem:[#allocation2]]
  %v16 = vld [vmem:[%s1] sm:$0xff]
  %v17 = vld [vmem:[%s1 + $0x8] sm:$0xff]
  %v18 = vunpack.c.l.bf16 %v16
  %v19 = vunpack.c.h.bf16 %v16
  %v20 = vunpack.c.l.bf16 %v17
  %v21 = vunpack.c.h.bf16 %v17
  %v22 = vld [vmem:[%s2] sm:$0xff]
  %v23 = vld [vmem:[%s2 + $0x8] sm:$0xff]
  %v24 = vunpack.c.l.bf16 %v22
  %v25 = vunpack.c.h.bf16 %v22
  %v26 = vunpack.c.l.bf16 %v23
  %v27 = vunpack.c.h.bf16 %v23
  %v28 = vstv %s15
  %v29 = vmul.f32 %v18, %v28
  %v30 = vmul.f32 %v19, %v28
  %v31 = vmul.f32 %v20, %v28
  %v32 = vmul.f32 %v21, %v28
  %s33 = ssub.f32 1.0, %s15
  %v34 = vstv %s33
  %v35 = vmul.f32 %v34, %v24
  %v36 = vmul.f32 %v34, %v25
  %v37 = vmul.f32 %v34, %v26
  %v38 = vmul.f32 %v34, %v27
  %v39 = vadd.f32 %v29, %v35
  %v40 = vadd.f32 %v30, %v36
  %v41 = vadd.f32 %v31, %v37
  %v42 = vadd.f32 %v32, %v38
  %v43 = vpack.c.bf16 %v39, %v39
  %v44 = vpack.c.bf16 %v40, %v40
  %v45 = vpack.c.bf16 %v41, %v41
  %v46 = vpack.c.bf16 %v42, %v42
  %v51 = vunpack.c.l.b16 %v43
  %v52 = vunpack.c.l.b16 %v44
  %v53 = vunpack.c.l.b16 %v45
  %v54 = vunpack.c.l.b16 %v46
  %v55 = vpack.c.b16 %v52, %v51
  %v56 = vpack.c.b16 %v54, %v53
  %59 = vst [vmem:[%s3] sm:$0xff] %v55
  %60 = vst [vmem:[%s3 + $0x8] sm:$0xff] %v56
  // Predicated region
  $region14: #{_momentum_update_impl.3} parent=0 // pred_check
    _
  $region15: #{_momentum_update_impl.3} parent=0 // pred_check_branch
    %62 = sbr.rel (0) target = $region17
  $region16: #{_momentum_update_impl.3} parent=0 // pred_region
    _
  $region17: #{_momentum_update_impl.3} parent=0 // pred_fallthru
    _
  // Predicated region
  $region18: #{_momentum_update_impl.3} parent=0 // pred_check
    _
  $region19: #{_momentum_update_impl.3} parent=0 // pred_check_branch
    %64 = sbr.rel (0) target = $region21
  $region20: #{_momentum_update_impl.3} parent=0 // pred_region
    _
  $region21: #{_momentum_update_impl.3} parent=0 // pred_fallthru
    _

// kernel: _momentum_update_impl.2
$region0: #{_momentum_update_impl.2}
  #allocation0 [shape = 'u32[]', space=smem, size = 0x4, offset = 0x4, fixed_abs, tag = 'smem constant byte address 0x4 - core index']
  #allocation1 [shape = 'u32[144,128]{1,0:T(1,128)}', space=vmem, size = 0x12000, scoped, tag = 'internal scratch']
  #allocation2 [shape = 'f32[1]{0:T(128)S(6)}', space=smem, size = 0x200, scoped, tag = 'scoped memory for _momentum_update_impl.2']
  %s0 = inlined_call_operand.<no memory space> [shape: f32[1], index: 0, kind: input, shape index: {}]
  %s1 = inlined_call_operand.vmem [shape: f32[8,512], index: 1, kind: input, shape index: {}, may-alias: {1,3}]
  %s2 = inlined_call_operand.vmem [shape: f32[8,512], index: 2, kind: input, shape index: {}]
  %s3 = inlined_call_operand.vmem [shape: f32[8,512], index: 3, kind: output, shape index: {}, may-alias: {1,3}]
  %s4 = sld [smem:[#allocation0]]
  $region22: #{_momentum_update_impl.2} parent=0
    _
  %s6 = ssub.s32 1, %s4
  %s7 = scalar_select 0, %s6, %s4
  %8 = sst [smem:[#allocation2]] %s0
  // Predicated region
  $region2: #{_momentum_update_impl.2} parent=0 // pred_check
    _
  $region3: #{_momentum_update_impl.2} parent=0 // pred_check_branch
    %10 = sbr.rel (0) target = $region5
  $region4: #{_momentum_update_impl.2} parent=0 // pred_region
    _
  $region5: #{_momentum_update_impl.2} parent=0 // pred_fallthru
    _
  // Predicated region
  $region6: #{_momentum_update_impl.2} parent=0 // pred_check
    _
  $region7: #{_momentum_update_impl.2} parent=0 // pred_check_branch
    %12 = sbr.rel (0) target = $region9
  $region8: #{_momentum_update_impl.2} parent=0 // pred_region
    _
  $region9: #{_momentum_update_impl.2} parent=0 // pred_fallthru
    _
  // Predicated region
  $region10: #{_momentum_update_impl.2} parent=0 // pred_check
    _
  $region11: #{_momentum_update_impl.2} parent=0 // pred_check_branch
    %14 = sbr.rel (0) target = $region13
  $region12: #{_momentum_update_impl.2} parent=0 // pred_region
    _
  $region13: #{_momentum_update_impl.2} parent=0 // pred_fallthru
    _
  %s15 = sld [smem:[#allocation2]]
  %v16 = vld [vmem:[%s1] sm:$0xff]
  %v17 = vld [vmem:[%s1 + $0x8] sm:$0xff]
  %v18 = vld [vmem:[%s1 + $0x10] sm:$0xff]
  %v19 = vld [vmem:[%s1 + $0x18] sm:$0xff]
  %v20 = vld [vmem:[%s2] sm:$0xff]
  %v21 = vld [vmem:[%s2 + $0x8] sm:$0xff]
  %v22 = vld [vmem:[%s2 + $0x10] sm:$0xff]
  %v23 = vld [vmem:[%s2 + $0x18] sm:$0xff]
  %v24 = vstv %s15
  %v25 = vmul.f32 %v16, %v24
  %v26 = vmul.f32 %v17, %v24
  %v27 = vmul.f32 %v18, %v24
  %v28 = vmul.f32 %v19, %v24
  %s29 = ssub.f32 1.0, %s15
  %v30 = vstv %s29
  %v31 = vmul.f32 %v30, %v20
  %v32 = vmul.f32 %v30, %v21
  %v33 = vmul.f32 %v30, %v22
  %v34 = vmul.f32 %v30, %v23
  %v35 = vadd.f32 %v25, %v31
  %v36 = vadd.f32 %v26, %v32
  %v37 = vadd.f32 %v27, %v33
  %v38 = vadd.f32 %v28, %v34
  %39 = vst [vmem:[%s3] sm:$0xff] %v35
  %40 = vst [vmem:[%s3 + $0x8] sm:$0xff] %v36
  %41 = vst [vmem:[%s3 + $0x10] sm:$0xff] %v37
  %42 = vst [vmem:[%s3 + $0x18] sm:$0xff] %v38
  // Predicated region
  $region14: #{_momentum_update_impl.2} parent=0 // pred_check
    _
  $region15: #{_momentum_update_impl.2} parent=0 // pred_check_branch
    %44 = sbr.rel (0) target = $region17
  $region16: #{_momentum_update_impl.2} parent=0 // pred_region
    _
  $region17: #{_momentum_update_impl.2} parent=0 // pred_fallthru
    _
  // Predicated region
  $region18: #{_momentum_update_impl.2} parent=0 // pred_check
    _
  $region19: #{_momentum_update_impl.2} parent=0 // pred_check_branch
    %46 = sbr.rel (0) target = $region21
  $region20: #{_momentum_update_impl.2} parent=0 // pred_region
    _
  $region21: #{_momentum_update_impl.2} parent=0 // pred_fallthru
    _

</llo_original>
